<compile_context>
chip_gen: v7x
topology: tpu7x:2x2x1
jax: 0.10.0
libtpu: 0.0.40
codegen_flags: <defaults>
</compile_context>

<pallas_src>
import jax
import jax.numpy as jnp
from jax.experimental import pallas as pl
from jax.experimental.pallas import tpu as pltpu

NEG_SLOPE = 0.01  # nn.LeakyReLU default

# Target lane-tile for the batch axis.  Per-lane live VMEM is ~300-400 B
# (x + h intermediates + fused output, I/O double-buffered), so 32K lanes is
# ~12-15 MiB -- fits v7x (64 MiB physical) with headroom and v5e/v6e easily.
_TARGET_TILE_B = 32 * 1024


def _leaky_relu(x):
    return jnp.where(x > 0, x, NEG_SLOPE * x)


def tb_forward_kernel(x_ref, w1_ref, b1_ref, w2_ref, b2_ref, w3_ref, b3_ref,
                      out_ref):
    # Transposed (batch-on-lane) layout: every tensor is (features, batch_tile).
    x = x_ref[...].astype(jnp.float32)                                # (ndim, T)

    h = jnp.dot(w1_ref[...], x, preferred_element_type=jnp.float32) + b1_ref[...]
    h = _leaky_relu(h)                                                # (H1, T)
    h = jnp.dot(w2_ref[...], h, preferred_element_type=jnp.float32) + b2_ref[...]
    h = _leaky_relu(h)                                                # (H2, T)

    # Single fused output head: rows [0, ndim) are P_F, rows [ndim, 2*ndim) are P_B.
    p = jnp.dot(w3_ref[...], h, preferred_element_type=jnp.float32) + b3_ref[...]

    # Single mask expression.  g = [1-x ; x]:
    #   top rows:    p_f*(1-x) + x*(-100)
    #   bottom rows: p_b*x + (1-x)*(-100)
    g = jnp.concatenate([1.0 - x, x], axis=0)                         # (2*ndim, T)
    out_ref[...] = (p * g + (1.0 - g) * (-100.0)).astype(out_ref.dtype)


def _tile_and_pad(batch, tile_b=None):
    """Choose a lane-aligned batch tile and the padded batch extent."""
    b_lane = pl.cdiv(max(batch, 1), 128) * 128
    if tile_b is not None:
        t = pl.cdiv(max(128, min(tile_b, b_lane)), 128) * 128
    elif b_lane <= 256:
        t = b_lane
    else:
        # >= 2 grid steps so the "parallel" batch axis can shard across v7x's
        # two TensorCores; cap at the VMEM-safe target tile.
        t = min(_TARGET_TILE_B, pl.cdiv(pl.cdiv(b_lane, 2), 128) * 128)
    b_pad = pl.cdiv(b_lane, t) * t
    return t, b_pad


def _pallas_tb(x_t, params, tile_b, out_dtype):
    """Core pallas_call. x_t: (ndim, b_pad) with b_pad % tile_b == 0.

    Returns the fused (2*ndim, b_pad) masked-logit slab (P_F rows then P_B rows).
    """
    ndim, b_pad = x_t.shape
    w1, b1 = params["w1"], params["b1"]
    w2, b2 = params["w2"], params["b2"]
    w3, b3 = params["w3"], params["b3"]
    h1, h2 = w1.shape[0], w2.shape[0]
    # TODO(synk): uniform_backward_flow=True branch (P_B = ones_like) not wired
    # into the kernel; only the default (learned backward flow) path is implemented.
    assert w3.shape[0] == 2 * ndim, "kernel implements the 2*ndim output head"

    grid = (b_pad // tile_b,)
    batch_map = lambda i: (0, i)   # noqa: E731
    const_map = lambda i: (0, 0)   # noqa: E731  -- weights stay VMEM resident

    grid_spec = pltpu.PrefetchScalarGridSpec(
        num_scalar_prefetch=0,
        grid=grid,
        in_specs=[
            pl.BlockSpec((ndim, tile_b), batch_map),      # x (transposed)
            pl.BlockSpec((h1, ndim), const_map),          # w1
            pl.BlockSpec((h1, 1), const_map),             # b1
            pl.BlockSpec((h2, h1), const_map),            # w2
            pl.BlockSpec((h2, 1), const_map),             # b2
            pl.BlockSpec((2 * ndim, h2), const_map),      # w3 (full head)
            pl.BlockSpec((2 * ndim, 1), const_map),       # b3 (full head)
        ],
        out_specs=pl.BlockSpec((2 * ndim, tile_b), batch_map),
    )

    return pl.pallas_call(
        tb_forward_kernel,
        out_shape=jax.ShapeDtypeStruct((2 * ndim, b_pad), out_dtype),
        grid_spec=grid_spec,
        compiler_params=pltpu.CompilerParams(
            dimension_semantics=("parallel",),
            vmem_limit_bytes=64 << 20,   # raise v5e's 16 MiB default scoped limit
        ),
    )(x_t, w1, b1, w2, b2, w3, b3)


def tb_model_forward_t(x_t, params, *, tile_b=None, out_dtype=jnp.float32):
    """Transposed-layout entry point: x_t is (ndim, B); returns P_F_t, P_B_t as
    (ndim, B).  No wrapper transposes at all (preferred fast path)."""
    ndim, batch = x_t.shape
    t, b_pad = _tile_and_pad(batch, tile_b)
    if b_pad != batch:
        x_t = jnp.pad(x_t, ((0, 0), (0, b_pad - batch)))
    out = _pallas_tb(x_t, params, t, out_dtype)
    return out[:ndim, :batch], out[ndim:, :batch]


def tb_model_forward(x, params, *, tile_b=None, out_dtype=jnp.float32):
    """PyTorch-facing entry point: x is (B, ndim); returns P_F, P_B as (B, ndim)."""
    batch, ndim = x.shape
    t, b_pad = _tile_and_pad(batch, tile_b)
    # Fused pad + transpose (single XLA op instead of zeros + update-slice + T).
    x_t = jnp.pad(x.astype(jnp.float32), ((0, b_pad - batch), (0, 0))).T
    out_t = _pallas_tb(x_t, params, t, out_dtype)
    # One transpose pass over the fused slab, then cheap contiguous splits.
    out = out_t[:, :batch].T                      # (B, 2*ndim)
    return out[:, :ndim], out[:, ndim:]


def init_params(key, ndim, hidden_dims=(20, 20), uniform_backward_flow=False):
    """Deterministic init mirroring nn.Linear default (uniform +-1/sqrt(fan_in)).

    Weights stored as (out_features, in_features); biases as (out_features, 1)
    -- the kernel's transposed (batch-on-lane) layout.
    """
    output_dim = ndim if uniform_backward_flow else 2 * ndim
    dims = [ndim] + list(hidden_dims) + [output_dim]
    params = {}
    for i in range(len(dims) - 1):
        fan_in, fan_out = dims[i], dims[i + 1]
        key, kw, kb = jax.random.split(key, 3)
        bound = 1.0 / jnp.sqrt(float(fan_in))
        params[f"w{i + 1}"] = jax.random.uniform(
            kw, (fan_out, fan_in), jnp.float32, minval=-bound, maxval=bound)
        params[f"b{i + 1}"] = jax.random.uniform(
            kb, (fan_out, 1), jnp.float32, minval=-bound, maxval=bound)
    params["logZ"] = jnp.ones((1,), jnp.float32)  # unused in forward()
    return params


def reference_forward(x, params):
    """Pure-JAX reference for correctness checking (weights are (out, in))."""
    x = x.astype(jnp.float32)
    h = _leaky_relu(x @ params["w1"].T + params["b1"].T)
    h = _leaky_relu(h @ params["w2"].T + params["b2"].T)
    logits = h @ params["w3"].T + params["b3"].T
    ndim = x.shape[-1]
    p_f, p_b = logits[:, :ndim], logits[:, ndim:]
    p_f = p_f * (1.0 - x) + x * (-100.0)
    p_b = p_b * x + (1.0 - x) * (-100.0)
    return p_f, p_b


if __name__ == "__main__":
    ndim = 4
    key = jax.random.PRNGKey(0)
    key_x, key_x2, key_x3, key_p = jax.random.split(key, 4)

    params = init_params(key_p, ndim, hidden_dims=(20, 20),
                         uniform_backward_flow=False)

    # 1) Small batch (single 128-lane tile, grid=(1,)).
    batch = 8
    x = jax.random.bernoulli(key_x, p=0.5, shape=(batch, ndim)).astype(jnp.float32)
    p_f, p_b = tb_model_forward(x, params)
    jax.block_until_ready((p_f, p_b))
    rf, rb = reference_forward(x, params)
    assert p_f.shape == (batch, ndim) and p_b.shape == (batch, ndim)
    assert jnp.allclose(p_f, rf, atol=1e-5), "P_F mismatch (small batch)"
    assert jnp.allclose(p_b, rb, atol=1e-5), "P_B mismatch (small batch)"

    # 2) Non-divisible batch with an explicit small tile -> multi-step grid + padding.
    batch2 = 1000
    x2 = jax.random.bernoulli(key_x2, p=0.5, shape=(batch2, ndim)).astype(jnp.float32)
    p_f2, p_b2 = tb_model_forward(x2, params, tile_b=256)
    jax.block_until_ready((p_f2, p_b2))
    rf2, rb2 = reference_forward(x2, params)
    assert jnp.allclose(p_f2, rf2, atol=1e-5), "P_F mismatch (gridded batch)"
    assert jnp.allclose(p_b2, rb2, atol=1e-5), "P_B mismatch (gridded batch)"

    # 3) Transposed-layout fast path (no wrapper transposes) + auto >=2-step grid.
    batch3 = 300
    x3 = jax.random.bernoulli(key_x3, p=0.5, shape=(batch3, ndim)).astype(jnp.float32)
    pf_t, pb_t = tb_model_forward_t(x3.T, params)
    jax.block_until_ready((pf_t, pb_t))
    rf3, rb3 = reference_forward(x3, params)
    assert pf_t.shape == (ndim, batch3) and pb_t.shape == (ndim, batch3)
    assert jnp.allclose(pf_t.T, rf3, atol=1e-5), "P_F mismatch (transposed API)"
    assert jnp.allclose(pb_t.T, rb3, atol=1e-5), "P_B mismatch (transposed API)"

    print("KERNEL_OK")
</pallas_src>

<mosaic_0001>
module attributes {stable_mosaic.version = 11 : i64} {
  func.func @tb_forward_kernel(%arg0: i32, %arg1: memref<4x128xf32, #tpu.memory_space<vmem>>, %arg2: memref<20x4xf32, #tpu.memory_space<vmem>>, %arg3: memref<20x1xf32, #tpu.memory_space<vmem>>, %arg4: memref<20x20xf32, #tpu.memory_space<vmem>>, %arg5: memref<20x1xf32, #tpu.memory_space<vmem>>, %arg6: memref<8x20xf32, #tpu.memory_space<vmem>>, %arg7: memref<8x1xf32, #tpu.memory_space<vmem>>, %arg8: memref<8x128xf32, #tpu.memory_space<vmem>>) attributes {dimension_semantics = [#tpu.dimension_semantics<parallel>], iteration_bounds = array<i64: 1>, scalar_prefetch = 0 : i64, scratch_operands = 0 : i64, tpu.core_type = #tpu.core_type<tc>, window_params = [{transform_indices = @transform_0, window_bounds = array<i64: 4, 128>}, {pipeline_mode = #tpu.pipeline_mode<synchronous>, transform_indices = @transform_1, window_bounds = array<i64: 20, 4>}, {pipeline_mode = #tpu.pipeline_mode<synchronous>, transform_indices = @transform_2, window_bounds = array<i64: 20, 1>}, {pipeline_mode = #tpu.pipeline_mode<synchronous>, transform_indices = @transform_3, window_bounds = array<i64: 20, 20>}, {pipeline_mode = #tpu.pipeline_mode<synchronous>, transform_indices = @transform_4, window_bounds = array<i64: 20, 1>}, {pipeline_mode = #tpu.pipeline_mode<synchronous>, transform_indices = @transform_5, window_bounds = array<i64: 8, 20>}, {pipeline_mode = #tpu.pipeline_mode<synchronous>, transform_indices = @transform_6, window_bounds = array<i64: 8, 1>}, {transform_indices = @transform_7, window_bounds = array<i64: 8, 128>}]} {
    %c0 = arith.constant 0 : index
    %c0_0 = arith.constant 0 : index
    %0 = vector.load %arg1[%c0, %c0_0] : memref<4x128xf32, #tpu.memory_space<vmem>>, vector<4x128xf32>
    %c0_1 = arith.constant 0 : index
    %c0_2 = arith.constant 0 : index
    %1 = vector.load %arg2[%c0_1, %c0_2] : memref<20x4xf32, #tpu.memory_space<vmem>>, vector<20x4xf32>
    %cst = arith.constant dense<0.000000e+00> : vector<20x128xf32>
    %2 = tpu.matmul %1, %0, %cst {dimension_numbers = #tpu.dot_dimension_numbers<[1], [0], [0], [1], [0, 0, 1, 1], [], []>} : vector<20x4xf32>, vector<4x128xf32>, vector<20x128xf32> -> vector<20x128xf32>
    %c0_3 = arith.constant 0 : index
    %c0_4 = arith.constant 0 : index
    %3 = vector.load %arg3[%c0_3, %c0_4] : memref<20x1xf32, #tpu.memory_space<vmem>>, vector<20x1xf32>
    %4 = vector.broadcast %3 : vector<20x1xf32> to vector<20x128xf32>
    %5 = arith.addf %2, %4 : vector<20x128xf32>
    %cst_5 = arith.constant 0.000000e+00 : f32
    %6 = vector.broadcast %cst_5 : f32 to vector<20x128xf32>
    %7 = arith.cmpf ogt, %5, %6 : vector<20x128xf32>
    %cst_6 = arith.constant 0.00999999977 : f32
    %8 = vector.broadcast %cst_6 : f32 to vector<20x128xf32>
    %9 = arith.mulf %8, %5 : vector<20x128xf32>
    %10 = arith.select %7, %5, %9 : vector<20x128xi1>, vector<20x128xf32>
    %c0_7 = arith.constant 0 : index
    %c0_8 = arith.constant 0 : index
    %11 = vector.load %arg4[%c0_7, %c0_8] : memref<20x20xf32, #tpu.memory_space<vmem>>, vector<20x20xf32>
    %cst_9 = arith.constant dense<0.000000e+00> : vector<20x128xf32>
    %12 = tpu.matmul %11, %10, %cst_9 {dimension_numbers = #tpu.dot_dimension_numbers<[1], [0], [0], [1], [0, 0, 1, 1], [], []>} : vector<20x20xf32>, vector<20x128xf32>, vector<20x128xf32> -> vector<20x128xf32>
    %c0_10 = arith.constant 0 : index
    %c0_11 = arith.constant 0 : index
    %13 = vector.load %arg5[%c0_10, %c0_11] : memref<20x1xf32, #tpu.memory_space<vmem>>, vector<20x1xf32>
    %14 = vector.broadcast %13 : vector<20x1xf32> to vector<20x128xf32>
    %15 = arith.addf %12, %14 : vector<20x128xf32>
    %cst_12 = arith.constant 0.000000e+00 : f32
    %16 = vector.broadcast %cst_12 : f32 to vector<20x128xf32>
    %17 = arith.cmpf ogt, %15, %16 : vector<20x128xf32>
    %cst_13 = arith.constant 0.00999999977 : f32
    %18 = vector.broadcast %cst_13 : f32 to vector<20x128xf32>
    %19 = arith.mulf %18, %15 : vector<20x128xf32>
    %20 = arith.select %17, %15, %19 : vector<20x128xi1>, vector<20x128xf32>
    %c0_14 = arith.constant 0 : index
    %c0_15 = arith.constant 0 : index
    %21 = vector.load %arg6[%c0_14, %c0_15] : memref<8x20xf32, #tpu.memory_space<vmem>>, vector<8x20xf32>
    %cst_16 = arith.constant dense<0.000000e+00> : vector<8x128xf32>
    %22 = tpu.matmul %21, %20, %cst_16 {dimension_numbers = #tpu.dot_dimension_numbers<[1], [0], [0], [1], [0, 0, 1, 1], [], []>} : vector<8x20xf32>, vector<20x128xf32>, vector<8x128xf32> -> vector<8x128xf32>
    %c0_17 = arith.constant 0 : index
    %c0_18 = arith.constant 0 : index
    %23 = vector.load %arg7[%c0_17, %c0_18] : memref<8x1xf32, #tpu.memory_space<vmem>>, vector<8x1xf32>
    %24 = vector.broadcast %23 : vector<8x1xf32> to vector<8x128xf32>
    %25 = arith.addf %22, %24 : vector<8x128xf32>
    %cst_19 = arith.constant 1.000000e+00 : f32
    %26 = vector.broadcast %cst_19 : f32 to vector<4x128xf32>
    %27 = arith.subf %26, %0 : vector<4x128xf32>
    %28 = tpu.concatenate %27, %0 in 0 : vector<4x128xf32>, vector<4x128xf32> -> vector<8x128xf32>
    %29 = arith.mulf %25, %28 : vector<8x128xf32>
    %cst_20 = arith.constant 1.000000e+00 : f32
    %30 = vector.broadcast %cst_20 : f32 to vector<8x128xf32>
    %31 = arith.subf %30, %28 : vector<8x128xf32>
    %cst_21 = arith.constant -1.000000e+02 : f32
    %32 = vector.broadcast %cst_21 : f32 to vector<8x128xf32>
    %33 = arith.mulf %31, %32 : vector<8x128xf32>
    %34 = arith.addf %29, %33 : vector<8x128xf32>
    %c0_22 = arith.constant 0 : index
    %c0_23 = arith.constant 0 : index
    %35 = vector.load %arg8[%c0_22, %c0_23] : memref<8x128xf32, #tpu.memory_space<vmem>>, vector<8x128xf32>
    tpu.vector_store %arg8[%c0_22, %c0_23], %34 {strides = array<i32>} : memref<8x128xf32, #tpu.memory_space<vmem>>, vector<8x128xf32>,
    return
  }
  func.func @transform_0(%arg0: i32) -> (i32, i32) {
    %c0_i32 = arith.constant 0 : i32
    %c0_i32_0 = arith.constant 0 : i32
    return %c0_i32, %arg0 : i32, i32
  }
  func.func @transform_1(%arg0: i32) -> (i32, i32) {
    %c0_i32 = arith.constant 0 : i32
    %c0_i32_0 = arith.constant 0 : i32
    %c0_i32_1 = arith.constant 0 : i32
    return %c0_i32, %c0_i32_0 : i32, i32
  }
  func.func @transform_2(%arg0: i32) -> (i32, i32) {
    %c0_i32 = arith.constant 0 : i32
    %c0_i32_0 = arith.constant 0 : i32
    %c0_i32_1 = arith.constant 0 : i32
    return %c0_i32, %c0_i32_0 : i32, i32
  }
  func.func @transform_3(%arg0: i32) -> (i32, i32) {
    %c0_i32 = arith.constant 0 : i32
    %c0_i32_0 = arith.constant 0 : i32
    %c0_i32_1 = arith.constant 0 : i32
    return %c0_i32, %c0_i32_0 : i32, i32
  }
  func.func @transform_4(%arg0: i32) -> (i32, i32) {
    %c0_i32 = arith.constant 0 : i32
    %c0_i32_0 = arith.constant 0 : i32
    %c0_i32_1 = arith.constant 0 : i32
    return %c0_i32, %c0_i32_0 : i32, i32
  }
  func.func @transform_5(%arg0: i32) -> (i32, i32) {
    %c0_i32 = arith.constant 0 : i32
    %c0_i32_0 = arith.constant 0 : i32
    %c0_i32_1 = arith.constant 0 : i32
    return %c0_i32, %c0_i32_0 : i32, i32
  }
  func.func @transform_6(%arg0: i32) -> (i32, i32) {
    %c0_i32 = arith.constant 0 : i32
    %c0_i32_0 = arith.constant 0 : i32
    %c0_i32_1 = arith.constant 0 : i32
    return %c0_i32, %c0_i32_0 : i32, i32
  }
  func.func @transform_7(%arg0: i32) -> (i32, i32) {
    %c0_i32 = arith.constant 0 : i32
    %c0_i32_0 = arith.constant 0 : i32
    return %c0_i32, %arg0 : i32, i32
  }
}

</mosaic_0001>

<llo_original>
// kernel: tpu_custom_call.1
$region0: #{tpu_custom_call.1}
  #allocation0 [shape = 'u32[]', space=smem, size = 0x4, offset = 0x4, fixed_abs, tag = 'smem constant byte address 0x4 - core index']
  #allocation1 [shape = 'u32[144,128]{1,0:T(1,128)}', space=vmem, size = 0x12000, scoped, tag = 'internal scratch']
  %s0 = inlined_call_operand.hbm [shape: f32[4,128], index: 0, kind: input, shape index: {}]
  %s1 = inlined_call_operand.hbm [shape: f32[20,4], index: 1, kind: input, shape index: {}]
  %s2 = inlined_call_operand.hbm [shape: f32[20,1], index: 2, kind: input, shape index: {}]
  %s3 = inlined_call_operand.hbm [shape: f32[20,20], index: 3, kind: input, shape index: {}]
  %s4 = inlined_call_operand.hbm [shape: f32[20,1], index: 4, kind: input, shape index: {}]
  %s5 = inlined_call_operand.hbm [shape: f32[8,20], index: 5, kind: input, shape index: {}]
  %s6 = inlined_call_operand.hbm [shape: f32[8,1], index: 6, kind: input, shape index: {}]
  %s7 = inlined_call_operand.hbm [shape: f32[8,128], index: 7, kind: output, shape index: {}]
  %s8 = sld [smem:[#allocation0]]
  $region66: #{tpu_custom_call.1} parent=0
    _
  %s10 = ssub.s32 1, %s8
  %s11 = scalar_select 0, %s10, %s8
  $region1: #{tpu_custom_call.1} parent=0
    #allocation2 [shape = 'u8[2048]{0}', space=vmem, size = 0x800, scoped, tag = 'input window, operand 0, single buffered']
    #allocation3 [shape = 's32[1]{0}', space=sflag, size = 0x4, scoped, tag = 'scoped memory for tpu_custom_call.1']
    #allocation4 [shape = 's32[1]{0}', space=sflag, size = 0x4, scoped, tag = 'scoped memory for tpu_custom_call.1']
    #allocation5 [shape = 'u8[12288]{0}', space=vmem, size = 0x3000, scoped, tag = 'input window, operand 1, single buffered']
    #allocation6 [shape = 's32[1]{0}', space=sflag, size = 0x4, scoped, tag = 'scoped memory for tpu_custom_call.1']
    #allocation7 [shape = 'u8[12288]{0}', space=vmem, size = 0x3000, scoped, tag = 'input window, operand 2, single buffered']
    #allocation8 [shape = 'u8[12288]{0}', space=vmem, size = 0x3000, scoped, tag = 'input window, operand 3, single buffered']
    #allocation9 [shape = 's32[1]{0}', space=sflag, size = 0x4, scoped, tag = 'scoped memory for tpu_custom_call.1']
    #allocation10 [shape = 'u8[12288]{0}', space=vmem, size = 0x3000, scoped, tag = 'input window, operand 4, single buffered']
    #allocation11 [shape = 'u8[4096]{0}', space=vmem, size = 0x1000, scoped, tag = 'input window, operand 5, single buffered']
    #allocation12 [shape = 's32[1]{0}', space=sflag, size = 0x4, scoped, tag = 'scoped memory for tpu_custom_call.1']
    #allocation13 [shape = 'u8[4096]{0}', space=vmem, size = 0x1000, scoped, tag = 'input window, operand 6, single buffered']
    #allocation14 [shape = 'u8[4096]{0}', space=vmem, size = 0x1000, scoped, tag = 'output window, operand 0, single buffered']
    %12 = vsyncpa [#allocation3], 0
    %13 = vsyncpa [#allocation6], 0
    %14 = vsyncpa [#allocation9], 0
    %15 = vsyncpa [#allocation12], 0
    %16 = vsyncpa [#allocation4], 0
    // Predicated region
    $region2: #{tpu_custom_call.1} parent=1 // pred_check
      _
    $region3: #{tpu_custom_call.1} parent=1 // pred_check_branch
      %18 = sbr.rel (0) target = $region5
    $region4: #{tpu_custom_call.1} parent=1 // pred_region
      %s20 = ssub.s32 64, 64
      %21 = vsyncadd [#allocation3], %s20
      %s23 = sshll.u32 [#allocation2], 4
      %s24 = int_to_ptr.vmem [resolvable:$true] %s23
      %26 = dma.hbm_to_vmem [thread:$0]  %s0, 64, %s24, [#allocation3]
    $region5: #{tpu_custom_call.1} parent=1 // pred_fallthru
      _
    // Predicated region
    $region6: #{tpu_custom_call.1} parent=1 // pred_check
      _
    $region7: #{tpu_custom_call.1} parent=1 // pred_check_branch
      %28 = sbr.rel (0) target = $region9
    $region8: #{tpu_custom_call.1} parent=1 // pred_region
      %s30 = ssub.s32 384, 384
      %31 = vsyncadd [#allocation6], %s30
      %s32 = sshll.u32 [#allocation5], 4
      %s33 = int_to_ptr.vmem [resolvable:$true] %s32
      %38 = dma.hbm_to_vmem [thread:$0]  %s1, 384, %s33, [#allocation6], 128, 128, 8
    $region9: #{tpu_custom_call.1} parent=1 // pred_fallthru
      _
    // Predicated region
    $region10: #{tpu_custom_call.1} parent=1 // pred_check
      _
    $region11: #{tpu_custom_call.1} parent=1 // pred_check_branch
      %40 = sbr.rel (0) target = $region13
    $region12: #{tpu_custom_call.1} parent=1 // pred_region
      %s42 = ssub.s32 384, 384
      %43 = vsyncadd [#allocation6], %s42
      %s44 = sshll.u32 [#allocation7], 4
      %s45 = int_to_ptr.vmem [resolvable:$true] %s44
      %50 = dma.hbm_to_vmem [thread:$0]  %s2, 384, %s45, [#allocation6], 128, 128, 8
    $region13: #{tpu_custom_call.1} parent=1 // pred_fallthru
      _
    // Predicated region
    $region14: #{tpu_custom_call.1} parent=1 // pred_check
      _
    $region15: #{tpu_custom_call.1} parent=1 // pred_check_branch
      %52 = sbr.rel (0) target = $region17
    $region16: #{tpu_custom_call.1} parent=1 // pred_region
      %s54 = ssub.s32 384, 384
      %55 = vsyncadd [#allocation9], %s54
      %s56 = sshll.u32 [#allocation8], 4
      %s57 = int_to_ptr.vmem [resolvable:$true] %s56
      %62 = dma.hbm_to_vmem [thread:$0]  %s3, 384, %s57, [#allocation9], 128, 128, 8
    $region17: #{tpu_custom_call.1} parent=1 // pred_fallthru
      _
    // Predicated region
    $region18: #{tpu_custom_call.1} parent=1 // pred_check
      _
    $region19: #{tpu_custom_call.1} parent=1 // pred_check_branch
      %64 = sbr.rel (0) target = $region21
    $region20: #{tpu_custom_call.1} parent=1 // pred_region
      %s66 = ssub.s32 384, 384
      %67 = vsyncadd [#allocation9], %s66
      %s68 = sshll.u32 [#allocation10], 4
      %s69 = int_to_ptr.vmem [resolvable:$true] %s68
      %74 = dma.hbm_to_vmem [thread:$0]  %s4, 384, %s69, [#allocation9], 128, 128, 8
    $region21: #{tpu_custom_call.1} parent=1 // pred_fallthru
      _
    // Predicated region
    $region22: #{tpu_custom_call.1} parent=1 // pred_check
      _
    $region23: #{tpu_custom_call.1} parent=1 // pred_check_branch
      %76 = sbr.rel (0) target = $region25
    $region24: #{tpu_custom_call.1} parent=1 // pred_region
      %s78 = ssub.s32 128, 128
      %79 = vsyncadd [#allocation12], %s78
      %s81 = sshll.u32 [#allocation11], 4
      %s82 = int_to_ptr.vmem [resolvable:$true] %s81
      %84 = dma.hbm_to_vmem [thread:$0]  %s5, 128, %s82, [#allocation12]
    $region25: #{tpu_custom_call.1} parent=1 // pred_fallthru
      _
    // Predicated region
    $region26: #{tpu_custom_call.1} parent=1 // pred_check
      _
    $region27: #{tpu_custom_call.1} parent=1 // pred_check_branch
      %86 = sbr.rel (0) target = $region29
    $region28: #{tpu_custom_call.1} parent=1 // pred_region
      %s88 = ssub.s32 128, 128
      %89 = vsyncadd [#allocation12], %s88
      %s91 = sshll.u32 [#allocation13], 4
      %s92 = int_to_ptr.vmem [resolvable:$true] %s91
      %94 = dma.hbm_to_vmem [thread:$0]  %s6, 128, %s92, [#allocation12]
    $region29: #{tpu_custom_call.1} parent=1 // pred_fallthru
      _
    // Predicated region
    $region30: #{tpu_custom_call.1} parent=1 // pred_check
      _
    $region31: #{tpu_custom_call.1} parent=1 // pred_check_branch
      %96 = sbr.rel (0) target = $region33
    $region32: #{tpu_custom_call.1} parent=1 // pred_region
      %97 = dma.done [#allocation3], 64
    $region33: #{tpu_custom_call.1} parent=1 // pred_fallthru
      _
    // Predicated region
    $region34: #{tpu_custom_call.1} parent=1 // pred_check
      _
    $region35: #{tpu_custom_call.1} parent=1 // pred_check_branch
      %99 = sbr.rel (0) target = $region37
    $region36: #{tpu_custom_call.1} parent=1 // pred_region
      %100 = dma.done [#allocation6], 384
    $region37: #{tpu_custom_call.1} parent=1 // pred_fallthru
      _
    // Predicated region
    $region38: #{tpu_custom_call.1} parent=1 // pred_check
      _
    $region39: #{tpu_custom_call.1} parent=1 // pred_check_branch
      %102 = sbr.rel (0) target = $region41
    $region40: #{tpu_custom_call.1} parent=1 // pred_region
      %103 = dma.done [#allocation6], 384
    $region41: #{tpu_custom_call.1} parent=1 // pred_fallthru
      _
    // Predicated region
    $region42: #{tpu_custom_call.1} parent=1 // pred_check
      _
    $region43: #{tpu_custom_call.1} parent=1 // pred_check_branch
      %105 = sbr.rel (0) target = $region45
    $region44: #{tpu_custom_call.1} parent=1 // pred_region
      %106 = dma.done [#allocation9], 384
    $region45: #{tpu_custom_call.1} parent=1 // pred_fallthru
      _
    // Predicated region
    $region46: #{tpu_custom_call.1} parent=1 // pred_check
      _
    $region47: #{tpu_custom_call.1} parent=1 // pred_check_branch
      %108 = sbr.rel (0) target = $region49
    $region48: #{tpu_custom_call.1} parent=1 // pred_region
      %109 = dma.done [#allocation9], 384
    $region49: #{tpu_custom_call.1} parent=1 // pred_fallthru
      _
    // Predicated region
    $region50: #{tpu_custom_call.1} parent=1 // pred_check
      _
    $region51: #{tpu_custom_call.1} parent=1 // pred_check_branch
      %111 = sbr.rel (0) target = $region53
    $region52: #{tpu_custom_call.1} parent=1 // pred_region
      %112 = dma.done [#allocation12], 128
    $region53: #{tpu_custom_call.1} parent=1 // pred_fallthru
      _
    // Predicated region
    $region54: #{tpu_custom_call.1} parent=1 // pred_check
      _
    $region55: #{tpu_custom_call.1} parent=1 // pred_check_branch
      %114 = sbr.rel (0) target = $region57
    $region56: #{tpu_custom_call.1} parent=1 // pred_region
      %115 = dma.done [#allocation12], 128
    $region57: #{tpu_custom_call.1} parent=1 // pred_fallthru
      _
    %v116 = vld [vmem:[#allocation2] sm:$0xf]
    %v117 = vld [vmem:[#allocation5] sm:$0xff]
    %v118 = vld [vmem:[#allocation5 + $0x8] sm:$0xff]
    %v119 = vld [vmem:[#allocation5 + $0x10] sm:$0xf]
    %v120 = vld [vmem:[#allocation7] sm:$0xff]
    %v121 = vld [vmem:[#allocation7 + $0x8] sm:$0xff]
    %v122 = vld [vmem:[#allocation7 + $0x10] sm:$0xf]
    %124 = vset.pattern.permute.xlu0 0
    %125 = vperm.xlu0 %124, %v120
    %v126 = vpop.permute.xlu0 %125
    %129 = vset.pattern.permute.xlu0 0
    %130 = vperm.xlu0 %129, %v121
    %v131 = vpop.permute.xlu0 %130
    %134 = vset.pattern.permute.xlu0 0
    %135 = vperm.xlu0 %134, %v122
    %v136 = vpop.permute.xlu0 %135
    %vm138 = vcmask 31744
    %v140 = vsel %vm138, %v117, 0
    %v143 = vsel %vm138, %v118, 0
    %v146 = vsel %vm138, %v119, 0
    %vm148 = vcmask 1043456
    %v150 = vsel %vm148, %v116, 0
    %152 = vmatprep.subr.mxu0 0.0
    %153 = vmatpush1.msra.mxu0 %v150
    %154 = vmatprep.subr.mxu0 0.0
    %155 = vmatpush1.msra.mxu0 0.0
    %156 = vmatprep.subr.mxu0 0.0
    %157 = vmatpush1.msra.mxu0 0.0
    %158 = vmatprep.subr.mxu0 0.0
    %159 = vmatpush1.msra.mxu0 0.0
    %160 = vmatprep.subr.mxu0 0.0
    %161 = vmatpush1.msra.mxu0 0.0
    %162 = vmatprep.subr.mxu0 0.0
    %163 = vmatpush1.msra.mxu0 0.0
    %164 = vmatprep.subr.mxu0 0.0
    %165 = vmatpush1.msra.mxu0 0.0
    %166 = vmatprep.subr.mxu0 0.0
    %167 = vmatpush1.msra.mxu0 0.0
    %168 = vmatprep.subr.mxu0 0.0
    %169 = vmatpush1.msra.mxu0 0.0
    %170 = vmatprep.subr.mxu0 0.0
    %171 = vmatpush1.msra.mxu0 0.0
    %172 = vmatprep.subr.mxu0 0.0
    %173 = vmatpush1.msra.mxu0 0.0
    %174 = vmatprep.subr.mxu0 0.0
    %175 = vmatpush1.msra.mxu0 0.0
    %176 = vmatprep.subr.mxu0 0.0
    %177 = vmatpush1.msra.mxu0 0.0
    %178 = vmatprep.subr.mxu0 0.0
    %179 = vmatpush1.msra.mxu0 0.0
    %180 = vmatprep.subr.mxu0 0.0
    %181 = vmatpush1.msra.mxu0 0.0
    %182 = vmatprep.subr.mxu0 0.0
    %183 = vmatpush1.msra.mxu0 0.0
    %184 = vmatprep.subr.mxu0 0.0
    %185 = vmatpush1.msra.mxu0 0.0
    %186 = vmatprep.subr.mxu0 0.0
    %187 = vmatpush1.msra.mxu0 0.0
    %188 = vmatprep.subr.mxu0 0.0
    %189 = vmatpush1.msra.mxu0 0.0
    %190 = vmatprep.subr.mxu0 0.0
    %191 = vmatpush1.msra.mxu0 0.0
    %192 = vmatprep.subr.mxu0 0.0
    %193 = vmatpush1.msra.mxu0 0.0
    %194 = vmatprep.subr.mxu0 0.0
    %195 = vmatpush1.msra.mxu0 0.0
    %196 = vmatprep.subr.mxu0 0.0
    %197 = vmatpush1.msra.mxu0 0.0
    %198 = vmatprep.subr.mxu0 0.0
    %199 = vmatpush1.msra.mxu0 0.0
    %200 = vmatprep.subr.mxu0 0.0
    %201 = vmatpush1.msra.mxu0 0.0
    %202 = vmatprep.subr.mxu0 0.0
    %203 = vmatpush1.msra.mxu0 0.0
    %204 = vmatprep.subr.mxu0 0.0
    %205 = vmatpush1.msra.mxu0 0.0
    %206 = vmatprep.subr.mxu0 0.0
    %207 = vmatpush1.msra.mxu0 0.0
    %208 = vmatprep.subr.mxu0 0.0
    %209 = vmatpush1.msra.mxu0 0.0
    %210 = vmatprep.subr.mxu0 0.0
    %211 = vmatpush1.msra.mxu0 0.0
    %212 = vmatprep.subr.mxu0 0.0
    %213 = vmatpush1.msra.mxu0 0.0
    %214 = vmatprep.subr.mxu0 0.0
    %215 = vmatpush1.msra.mxu0 0.0
    %216 = vmatprep.mubr.f32.mxu0 0.0
    %217 = vmatmul.mubr.f32.gmra.mrb[0].mxu0 %v140
    %v218 = vpop.f32.mrb[0].mxu0
    %v219 = vadd.f32 %v126, %v218
    %v220 = vpop.f32.mrb[0].mxu0
    %221 = vmatprep.mubr.f32.mxu0 0.0
    %222 = vmatmul.mubr.f32.gmra.mrb[0].mxu0 %v143
    %v223 = vpop.f32.mrb[0].mxu0
    %v224 = vadd.f32 %v131, %v223
    %v225 = vpop.f32.mrb[0].mxu0
    %226 = vmatprep.mubr.f32.mxu0 0.0
    %227 = vmatmul.mubr.f32.gmra.mrb[0].mxu0 %v146
    %v228 = vpop.f32.mrb[0].mxu0
    %v229 = vadd.f32 %v136, %v228
    %v230 = vpop.f32.mrb[0].mxu0
    %231 = vdwg.mxu0
    %vm232 = vcmp.gt.f32.partialorder %v219, 0.0
    %vm233 = vcmp.gt.f32.partialorder %v224, 0.0
    %vm234 = vcmp.gt.f32.partialorder %v229, 0.0
    %v235 = vmul.f32 %v219, 0.01
    %v236 = vmul.f32 %v224, 0.01
    %v237 = vmul.f32 %v229, 0.01
    %v238 = vsel %vm232, %v219, %v235
    %v239 = vsel %vm233, %v224, %v236
    %v240 = vsel %vm234, %v229, %v237
    %v241 = vld [vmem:[#allocation8] sm:$0xff]
    %v242 = vld [vmem:[#allocation8 + $0x8] sm:$0xff]
    %v243 = vld [vmem:[#allocation8 + $0x10] sm:$0xf]
    %v244 = vld [vmem:[#allocation10] sm:$0xff]
    %v245 = vld [vmem:[#allocation10 + $0x8] sm:$0xff]
    %v246 = vld [vmem:[#allocation10 + $0x10] sm:$0xf]
    %248 = vset.pattern.permute.xlu0 0
    %249 = vperm.xlu0 %248, %v244
    %v250 = vpop.permute.xlu0 %249
    %253 = vset.pattern.permute.xlu0 0
    %254 = vperm.xlu0 %253, %v245
    %v255 = vpop.permute.xlu0 %254
    %258 = vset.pattern.permute.xlu0 0
    %259 = vperm.xlu0 %258, %v246
    %v260 = vpop.permute.xlu0 %259
    %vm262 = vcmask 162816
    %v264 = vsel %vm262, %v241, 0
    %v267 = vsel %vm262, %v242, 0
    %v270 = vsel %vm262, %v243, 0
    %v273 = vsel %vm148, %v240, 0
    %275 = vmatprep.subr.mxu0 0.0
    %276 = vmatpush1.msra.mxu0 %v238
    %277 = vmatprep.subr.mxu0 0.0
    %278 = vmatpush1.msra.mxu0 %v239
    %279 = vmatprep.subr.mxu0 0.0
    %280 = vmatpush1.msra.mxu0 %v273
    %281 = vmatprep.subr.mxu0 0.0
    %282 = vmatpush1.msra.mxu0 0.0
    %283 = vmatprep.subr.mxu0 0.0
    %284 = vmatpush1.msra.mxu0 0.0
    %285 = vmatprep.subr.mxu0 0.0
    %286 = vmatpush1.msra.mxu0 0.0
    %287 = vmatprep.subr.mxu0 0.0
    %288 = vmatpush1.msra.mxu0 0.0
    %289 = vmatprep.subr.mxu0 0.0
    %290 = vmatpush1.msra.mxu0 0.0
    %291 = vmatprep.subr.mxu0 0.0
    %292 = vmatpush1.msra.mxu0 0.0
    %293 = vmatprep.subr.mxu0 0.0
    %294 = vmatpush1.msra.mxu0 0.0
    %295 = vmatprep.subr.mxu0 0.0
    %296 = vmatpush1.msra.mxu0 0.0
    %297 = vmatprep.subr.mxu0 0.0
    %298 = vmatpush1.msra.mxu0 0.0
    %299 = vmatprep.subr.mxu0 0.0
    %300 = vmatpush1.msra.mxu0 0.0
    %301 = vmatprep.subr.mxu0 0.0
    %302 = vmatpush1.msra.mxu0 0.0
    %303 = vmatprep.subr.mxu0 0.0
    %304 = vmatpush1.msra.mxu0 0.0
    %305 = vmatprep.subr.mxu0 0.0
    %306 = vmatpush1.msra.mxu0 0.0
    %307 = vmatprep.subr.mxu0 0.0
    %308 = vmatpush1.msra.mxu0 0.0
    %309 = vmatprep.subr.mxu0 0.0
    %310 = vmatpush1.msra.mxu0 0.0
    %311 = vmatprep.subr.mxu0 0.0
    %312 = vmatpush1.msra.mxu0 0.0
    %313 = vmatprep.subr.mxu0 0.0
    %314 = vmatpush1.msra.mxu0 0.0
    %315 = vmatprep.subr.mxu0 0.0
    %316 = vmatpush1.msra.mxu0 0.0
    %317 = vmatprep.subr.mxu0 0.0
    %318 = vmatpush1.msra.mxu0 0.0
    %319 = vmatprep.subr.mxu0 0.0
    %320 = vmatpush1.msra.mxu0 0.0
    %321 = vmatprep.subr.mxu0 0.0
    %322 = vmatpush1.msra.mxu0 0.0
    %323 = vmatprep.subr.mxu0 0.0
    %324 = vmatpush1.msra.mxu0 0.0
    %325 = vmatprep.subr.mxu0 0.0
    %326 = vmatpush1.msra.mxu0 0.0
    %327 = vmatprep.subr.mxu0 0.0
    %328 = vmatpush1.msra.mxu0 0.0
    %329 = vmatprep.subr.mxu0 0.0
    %330 = vmatpush1.msra.mxu0 0.0
    %331 = vmatprep.subr.mxu0 0.0
    %332 = vmatpush1.msra.mxu0 0.0
    %333 = vmatprep.subr.mxu0 0.0
    %334 = vmatpush1.msra.mxu0 0.0
    %335 = vmatprep.subr.mxu0 0.0
    %336 = vmatpush1.msra.mxu0 0.0
    %337 = vmatprep.subr.mxu0 0.0
    %338 = vmatpush1.msra.mxu0 0.0
    %339 = vmatprep.mubr.f32.mxu0 0.0
    %340 = vmatmul.mubr.f32.gmra.mrb[0].mxu0 %v264
    %v341 = vpop.f32.mrb[0].mxu0
    %v342 = vadd.f32 %v250, %v341
    %v343 = vpop.f32.mrb[0].mxu0
    %344 = vmatprep.mubr.f32.mxu0 0.0
    %345 = vmatmul.mubr.f32.gmra.mrb[0].mxu0 %v267
    %v346 = vpop.f32.mrb[0].mxu0
    %v347 = vadd.f32 %v255, %v346
    %v348 = vpop.f32.mrb[0].mxu0
    %349 = vmatprep.mubr.f32.mxu0 0.0
    %350 = vmatmul.mubr.f32.gmra.mrb[0].mxu0 %v270
    %v351 = vpop.f32.mrb[0].mxu0
    %v352 = vadd.f32 %v260, %v351
    %v353 = vpop.f32.mrb[0].mxu0
    %354 = vdwg.mxu0
    %vm355 = vcmp.gt.f32.partialorder %v342, 0.0
    %vm356 = vcmp.gt.f32.partialorder %v347, 0.0
    %vm357 = vcmp.gt.f32.partialorder %v352, 0.0
    %v358 = vmul.f32 %v342, 0.01
    %v359 = vmul.f32 %v347, 0.01
    %v360 = vmul.f32 %v352, 0.01
    %v361 = vsel %vm355, %v342, %v358
    %v362 = vsel %vm356, %v347, %v359
    %v363 = vsel %vm357, %v352, %v360
    %v364 = vld [vmem:[#allocation11] sm:$0xff]
    %v365 = vld [vmem:[#allocation13] sm:$0xff]
    %367 = vset.pattern.permute.xlu0 0
    %368 = vperm.xlu0 %367, %v365
    %v369 = vpop.permute.xlu0 %368
    %v372 = vsel %vm262, %v364, 0
    %v375 = vsel %vm148, %v363, 0
    %377 = vmatprep.subr.mxu0 0.0
    %378 = vmatpush1.msra.mxu0 %v361
    %379 = vmatprep.subr.mxu0 0.0
    %380 = vmatpush1.msra.mxu0 %v362
    %381 = vmatprep.subr.mxu0 0.0
    %382 = vmatpush1.msra.mxu0 %v375
    %383 = vmatprep.subr.mxu0 0.0
    %384 = vmatpush1.msra.mxu0 0.0
    %385 = vmatprep.subr.mxu0 0.0
    %386 = vmatpush1.msra.mxu0 0.0
    %387 = vmatprep.subr.mxu0 0.0
    %388 = vmatpush1.msra.mxu0 0.0
    %389 = vmatprep.subr.mxu0 0.0
    %390 = vmatpush1.msra.mxu0 0.0
    %391 = vmatprep.subr.mxu0 0.0
    %392 = vmatpush1.msra.mxu0 0.0
    %393 = vmatprep.subr.mxu0 0.0
    %394 = vmatpush1.msra.mxu0 0.0
    %395 = vmatprep.subr.mxu0 0.0
    %396 = vmatpush1.msra.mxu0 0.0
    %397 = vmatprep.subr.mxu0 0.0
    %398 = vmatpush1.msra.mxu0 0.0
    %399 = vmatprep.subr.mxu0 0.0
    %400 = vmatpush1.msra.mxu0 0.0
    %401 = vmatprep.subr.mxu0 0.0
    %402 = vmatpush1.msra.mxu0 0.0
    %403 = vmatprep.subr.mxu0 0.0
    %404 = vmatpush1.msra.mxu0 0.0
    %405 = vmatprep.subr.mxu0 0.0
    %406 = vmatpush1.msra.mxu0 0.0
    %407 = vmatprep.subr.mxu0 0.0
    %408 = vmatpush1.msra.mxu0 0.0
    %409 = vmatprep.subr.mxu0 0.0
    %410 = vmatpush1.msra.mxu0 0.0
    %411 = vmatprep.subr.mxu0 0.0
    %412 = vmatpush1.msra.mxu0 0.0
    %413 = vmatprep.subr.mxu0 0.0
    %414 = vmatpush1.msra.mxu0 0.0
    %415 = vmatprep.subr.mxu0 0.0
    %416 = vmatpush1.msra.mxu0 0.0
    %417 = vmatprep.subr.mxu0 0.0
    %418 = vmatpush1.msra.mxu0 0.0
    %419 = vmatprep.subr.mxu0 0.0
    %420 = vmatpush1.msra.mxu0 0.0
    %421 = vmatprep.subr.mxu0 0.0
    %422 = vmatpush1.msra.mxu0 0.0
    %423 = vmatprep.subr.mxu0 0.0
    %424 = vmatpush1.msra.mxu0 0.0
    %425 = vmatprep.subr.mxu0 0.0
    %426 = vmatpush1.msra.mxu0 0.0
    %427 = vmatprep.subr.mxu0 0.0
    %428 = vmatpush1.msra.mxu0 0.0
    %429 = vmatprep.subr.mxu0 0.0
    %430 = vmatpush1.msra.mxu0 0.0
    %431 = vmatprep.subr.mxu0 0.0
    %432 = vmatpush1.msra.mxu0 0.0
    %433 = vmatprep.subr.mxu0 0.0
    %434 = vmatpush1.msra.mxu0 0.0
    %435 = vmatprep.subr.mxu0 0.0
    %436 = vmatpush1.msra.mxu0 0.0
    %437 = vmatprep.subr.mxu0 0.0
    %438 = vmatpush1.msra.mxu0 0.0
    %439 = vmatprep.subr.mxu0 0.0
    %440 = vmatpush1.msra.mxu0 0.0
    %441 = vmatprep.mubr.f32.mxu0 0.0
    %442 = vmatmul.mubr.f32.gmra.mrb[0].mxu0 %v372
    %v443 = vpop.f32.mrb[0].mxu0
    %v444 = vadd.f32 %v369, %v443
    %v445 = vpop.f32.mrb[0].mxu0
    %446 = vdwg.mxu0
    %v447 = vsub.f32 1.0, %v116
    %v448 = vrot.slane %v116, 4
    %v450 = vsel %vm148, %v447, %v448
    %v451 = vmul.f32 %v444, %v450
    %v452 = vsub.f32 1.0, %v450
    %v453 = vmul.f32 %v452, -100.0
    %v454 = vadd.f32 %v451, %v453
    %455 = vst [vmem:[#allocation14] sm:$0xff] %v454
    // Predicated region
    $region58: #{tpu_custom_call.1} parent=1 // pred_check
      _
    $region59: #{tpu_custom_call.1} parent=1 // pred_check_branch
      %457 = sbr.rel (0) target = $region61
    $region60: #{tpu_custom_call.1} parent=1 // pred_region
      %s459 = ssub.s32 128, 128
      %460 = vsyncadd [#allocation4], %s459
      %s462 = sshll.u32 [#allocation14], 4
      %s463 = int_to_ptr.vmem [resolvable:$true] %s462
      %465 = dma.vmem_to_hbm [thread:$0]  %s463, 128, %s7, [#allocation4]
    $region61: #{tpu_custom_call.1} parent=1 // pred_fallthru
      _
    // Predicated region
    $region62: #{tpu_custom_call.1} parent=1 // pred_check
      _
    $region63: #{tpu_custom_call.1} parent=1 // pred_check_branch
      %467 = sbr.rel (0) target = $region65
    $region64: #{tpu_custom_call.1} parent=1 // pred_region
      %468 = dma.done [#allocation4], 128
    $region65: #{tpu_custom_call.1} parent=1 // pred_fallthru
      _
    %469 = vsyncpa [#allocation3], 1
    %470 = vsyncpa [#allocation6], 1
    %471 = vsyncpa [#allocation9], 1
    %472 = vsyncpa [#allocation12], 1
    %473 = vsyncpa [#allocation4], 1

</llo_original>
